<compile_context>
chip_gen: v6e
topology: v6e:2x2x1
jax: 0.10.0
libtpu: 0.0.40
codegen_flags: <defaults>
</compile_context>

<pallas_src>
import functools

import jax
import jax.numpy as jnp
import numpy as np
from jax.experimental import pallas as pl
from jax.experimental.pallas import tpu as pltpu

# ---------------------------------------------------------------------------
# Problem sizes (small, consistent with an image classifier forward pass).
# ---------------------------------------------------------------------------
B, C, H, W = 2, 4, 16, 16      # batch, in-channels, spatial
OC = 8                         # conv out-channels
KH = KW = 3                    # conv kernel, padding=1, stride=1
NCLS = 10                      # number of classes

HW = H * W                     # 256
CK = C * KH * KW               # 36
K_AUG = CK + 1                 # 37  (ones row folds the conv bias in)
N_COLS = B * HW                # 512 (whole batch in the lane dimension)
NPAD = 128                     # lane-dense logits width; sliced to NCLS outside


# ---------------------------------------------------------------------------
# Pallas kernel: whole-batch  conv(im2col matmul) -> relu -> gap -> linear
# ---------------------------------------------------------------------------
def _cls_kernel(patches_ref, w2d_ref, pool_ref, wfc_ref, bfc_ref, out_ref):
    # patches_ref : (K_AUG, B*HW)  im2col columns for the whole batch,
    #                              last row is all-ones (carries conv bias)
    # w2d_ref     : (OC, K_AUG)    flattened conv weight, last col = conv bias
    # pool_ref    : (B, B*HW)      block-diagonal 1/(H*W) averaging matrix
    # wfc_ref     : (OC, NPAD)     FC weight zero-padded to 128 lanes
    # bfc_ref     : (1, NPAD)      FC bias zero-padded to 128 lanes
    # out_ref     : (B, NPAD)      lane-dense logits block

    # Conv (+bias) as a single MXU matmul over the whole batch.
    acc = jnp.dot(w2d_ref[...], patches_ref[...],
                  preferred_element_type=jnp.float32)        # (OC, B*HW)
    acc = jnp.maximum(acc, 0.0)                              # ReLU

    # Global average pool fused as A @ B^T: (B, B*HW) . (OC, B*HW) -> (B, OC).
    pooled = jax.lax.dot_general(
        pool_ref[...], acc,
        dimension_numbers=(((1,), (1,)), ((), ())),
        preferred_element_type=jnp.float32)                  # (B, OC)

    # FC into a lane-dense (B, 128) logits block.
    logits = jnp.dot(pooled, wfc_ref[...],
                     preferred_element_type=jnp.float32) + bfc_ref[...]
    out_ref[...] = logits.astype(out_ref.dtype)


@jax.jit
def _cls_forward(x, wconv, bconv, wfc, bfc):
    """x: (B, C, H, W) float32  ->  logits (B, NCLS) float32."""
    f32 = jnp.float32

    # ---- wrapper-side im2col (padding=1, stride=1) ----
    xp = jnp.pad(x, ((0, 0), (0, 0), (1, 1), (1, 1)))        # (B, C, H+2, W+2)
    taps = jnp.stack([xp[:, :, kh:kh + H, kw:kw + W]
                      for kh in range(KH) for kw in range(KW)],
                     axis=2)                                  # (B, C, 9, H, W)
    patches = taps.reshape(B, CK, HW)                         # k = c*9 + kh*3 + kw
    patches = jnp.transpose(patches, (1, 0, 2)).reshape(CK, N_COLS)
    patches = jnp.concatenate(
        [patches, jnp.ones((1, N_COLS), f32)], axis=0)        # (K_AUG, B*HW)

    # ---- wrapper-side weight / helper reshapes ----
    w2d = jnp.concatenate(
        [wconv.reshape(OC, CK), bconv.reshape(OC, 1)], axis=1)   # (OC, K_AUG)
    pool = jnp.repeat(jnp.eye(B, dtype=f32), HW, axis=1) / HW    # (B, B*HW)
    wfc_pad = jnp.zeros((OC, NPAD), f32).at[:, :NCLS].set(wfc)
    bfc_pad = jnp.zeros((1, NPAD), f32).at[:, :NCLS].set(bfc.reshape(1, NCLS))

    out = pl.pallas_call(
        _cls_kernel,
        out_shape=jax.ShapeDtypeStruct((B, NPAD), f32),
        grid_spec=pltpu.PrefetchScalarGridSpec(
            num_scalar_prefetch=0,
            grid=(1,),   # whole batch in one step: per-step overhead >> compute
            in_specs=[
                pl.BlockSpec((K_AUG, N_COLS), lambda i: (0, 0)),
                pl.BlockSpec((OC, K_AUG), lambda i: (0, 0)),
                pl.BlockSpec((B, N_COLS), lambda i: (0, 0)),
                pl.BlockSpec((OC, NPAD), lambda i: (0, 0)),
                pl.BlockSpec((1, NPAD), lambda i: (0, 0)),
            ],
            out_specs=pl.BlockSpec((B, NPAD), lambda i: (0, 0)),
        ),
        compiler_params=pltpu.CompilerParams(
            dimension_semantics=("arbitrary",)),
    )(patches, w2d, pool, wfc_pad, bfc_pad)

    return out[:, :NCLS]


# ---------------------------------------------------------------------------
# The wrapped "model": dict-in / dict-out classifier (like the torch model).
# ---------------------------------------------------------------------------
class SimpleClsModel:
    def __init__(self, params):
        self.params = params

    def __call__(self, input_dict):
        x = input_dict["image"]
        logits = _cls_forward(x, *self.params)
        return {"logits": logits}


# ---------------------------------------------------------------------------
# AttackModel: the module being implemented (dict plumbing around the model).
# ---------------------------------------------------------------------------
class AttackModel:
    def __init__(self, model, inName: str, outName: str, labelName: str):
        self.inputDict = {}
        self.inName = inName
        self.outName = outName
        self.labelName = labelName
        self.model = model
        # TODO(synk): cudnn.enabled toggling for 'BiModalPMA' has no JAX/TPU
        # equivalent; it is a framework-backend flag, not a compute op.

    def setInputDict(self, inputDict):
        self.inputDict = inputDict

    def forward(self, tensor):
        self.inputDict[self.inName] = tensor
        return self.model(self.inputDict)[self.outName]

    __call__ = forward


# ---------------------------------------------------------------------------
# Pure-JAX reference for correctness checking.
# ---------------------------------------------------------------------------
def _reference(x, wconv, bconv, wfc, bfc):
    y = jax.lax.conv_general_dilated(
        x, wconv, window_strides=(1, 1), padding="SAME",
        dimension_numbers=("NCHW", "OIHW", "NCHW"))
    y = y + bconv.reshape(1, OC, 1, 1)
    y = jnp.maximum(y, 0.0)
    pooled = jnp.mean(y, axis=(2, 3))            # (B, OC)
    return pooled @ wfc + bfc                    # (B, NCLS)


if __name__ == "__main__":
    key = jax.random.PRNGKey(0)
    k_x, k_wc, k_bc, k_wf, k_bf = jax.random.split(key, 5)

    x = jax.random.normal(k_x, (B, C, H, W), dtype=jnp.float32)
    wconv = jax.random.normal(k_wc, (OC, C, KH, KW), dtype=jnp.float32) * 0.1
    bconv = jax.random.normal(k_bc, (1, OC), dtype=jnp.float32) * 0.1
    wfc = jax.random.normal(k_wf, (OC, NCLS), dtype=jnp.float32) * 0.1
    bfc = jax.random.normal(k_bf, (1, NCLS), dtype=jnp.float32) * 0.1

    model = SimpleClsModel((wconv, bconv, wfc, bfc))
    attack = AttackModel(model, inName="image", outName="logits",
                         labelName="label")
    attack.setInputDict({"label": jnp.zeros((B,), dtype=jnp.int32)})

    out = attack(x)                              # AttackModel.forward
    out = jax.block_until_ready(out)

    ref = _reference(x, wconv, bconv.reshape(OC), wfc, bfc)
    np.testing.assert_allclose(np.asarray(out), np.asarray(ref),
                               rtol=1e-5, atol=1e-5)
    assert out.shape == (B, NCLS) and out.dtype == jnp.float32
    print("KERNEL_OK")
</pallas_src>

<mosaic_0001>
module attributes {stable_mosaic.version = 11 : i64} {
  func.func @_cls_kernel(%arg0: i32, %arg1: memref<37x512xf32, #tpu.memory_space<vmem>>, %arg2: memref<8x37xf32, #tpu.memory_space<vmem>>, %arg3: memref<2x512xf32, #tpu.memory_space<vmem>>, %arg4: memref<8x128xf32, #tpu.memory_space<vmem>>, %arg5: memref<1x128xf32, #tpu.memory_space<vmem>>, %arg6: memref<2x128xf32, #tpu.memory_space<vmem>>) attributes {dimension_semantics = [#tpu.dimension_semantics<arbitrary>], iteration_bounds = array<i64: 1>, scalar_prefetch = 0 : i64, scratch_operands = 0 : i64, tpu.core_type = #tpu.core_type<tc>, window_params = [{pipeline_mode = #tpu.pipeline_mode<synchronous>, transform_indices = @transform_0, window_bounds = array<i64: 37, 512>}, {pipeline_mode = #tpu.pipeline_mode<synchronous>, transform_indices = @transform_1, window_bounds = array<i64: 8, 37>}, {pipeline_mode = #tpu.pipeline_mode<synchronous>, transform_indices = @transform_2, window_bounds = array<i64: 2, 512>}, {pipeline_mode = #tpu.pipeline_mode<synchronous>, transform_indices = @transform_3, window_bounds = array<i64: 8, 128>}, {pipeline_mode = #tpu.pipeline_mode<synchronous>, transform_indices = @transform_4, window_bounds = array<i64: 1, 128>}, {pipeline_mode = #tpu.pipeline_mode<synchronous>, transform_indices = @transform_5, window_bounds = array<i64: 2, 128>}]} {
    %c0 = arith.constant 0 : index
    %c0_0 = arith.constant 0 : index
    %0 = vector.load %arg2[%c0, %c0_0] : memref<8x37xf32, #tpu.memory_space<vmem>>, vector<8x37xf32>
    %c0_1 = arith.constant 0 : index
    %c0_2 = arith.constant 0 : index
    %1 = vector.load %arg1[%c0_1, %c0_2] : memref<37x512xf32, #tpu.memory_space<vmem>>, vector<37x512xf32>
    %cst = arith.constant dense<0.000000e+00> : vector<8x512xf32>
    %2 = tpu.matmul %0, %1, %cst {dimension_numbers = #tpu.dot_dimension_numbers<[1], [0], [0], [1], [0, 0, 1, 1], [], []>} : vector<8x37xf32>, vector<37x512xf32>, vector<8x512xf32> -> vector<8x512xf32>
    %cst_3 = arith.constant 0.000000e+00 : f32
    %3 = vector.broadcast %cst_3 : f32 to vector<8x512xf32>
    %4 = arith.maximumf %2, %3 : vector<8x512xf32>
    %c0_4 = arith.constant 0 : index
    %c0_5 = arith.constant 0 : index
    %5 = vector.load %arg3[%c0_4, %c0_5] : memref<2x512xf32, #tpu.memory_space<vmem>>, vector<2x512xf32>
    %cst_6 = arith.constant dense<0.000000e+00> : vector<2x8xf32>
    %6 = tpu.matmul %5, %4, %cst_6 {dimension_numbers = #tpu.dot_dimension_numbers<[1], [1], [0], [0], [0, 0, 1, 0], [], []>} : vector<2x512xf32>, vector<8x512xf32>, vector<2x8xf32> -> vector<2x8xf32>
    %c0_7 = arith.constant 0 : index
    %c0_8 = arith.constant 0 : index
    %7 = vector.load %arg4[%c0_7, %c0_8] : memref<8x128xf32, #tpu.memory_space<vmem>>, vector<8x128xf32>
    %cst_9 = arith.constant dense<0.000000e+00> : vector<2x128xf32>
    %8 = tpu.matmul %6, %7, %cst_9 {dimension_numbers = #tpu.dot_dimension_numbers<[1], [0], [0], [1], [0, 0, 1, 1], [], []>} : vector<2x8xf32>, vector<8x128xf32>, vector<2x128xf32> -> vector<2x128xf32>
    %c0_10 = arith.constant 0 : index
    %c0_11 = arith.constant 0 : index
    %9 = vector.load %arg5[%c0_10, %c0_11] : memref<1x128xf32, #tpu.memory_space<vmem>>, vector<1x128xf32>
    %10 = vector.broadcast %9 : vector<1x128xf32> to vector<2x128xf32>
    %11 = arith.addf %8, %10 : vector<2x128xf32>
    %c0_12 = arith.constant 0 : index
    %c0_13 = arith.constant 0 : index
    %12 = vector.load %arg6[%c0_12, %c0_13] : memref<2x128xf32, #tpu.memory_space<vmem>>, vector<2x128xf32>
    tpu.vector_store %arg6[%c0_12, %c0_13], %11 {strides = array<i32>} : memref<2x128xf32, #tpu.memory_space<vmem>>, vector<2x128xf32>,
    return
  }
  func.func @transform_0(%arg0: i32) -> (i32, i32) {
    %c0_i32 = arith.constant 0 : i32
    %c0_i32_0 = arith.constant 0 : i32
    %c0_i32_1 = arith.constant 0 : i32
    return %c0_i32, %c0_i32_0 : i32, i32
  }
  func.func @transform_1(%arg0: i32) -> (i32, i32) {
    %c0_i32 = arith.constant 0 : i32
    %c0_i32_0 = arith.constant 0 : i32
    %c0_i32_1 = arith.constant 0 : i32
    return %c0_i32, %c0_i32_0 : i32, i32
  }
  func.func @transform_2(%arg0: i32) -> (i32, i32) {
    %c0_i32 = arith.constant 0 : i32
    %c0_i32_0 = arith.constant 0 : i32
    %c0_i32_1 = arith.constant 0 : i32
    return %c0_i32, %c0_i32_0 : i32, i32
  }
  func.func @transform_3(%arg0: i32) -> (i32, i32) {
    %c0_i32 = arith.constant 0 : i32
    %c0_i32_0 = arith.constant 0 : i32
    %c0_i32_1 = arith.constant 0 : i32
    return %c0_i32, %c0_i32_0 : i32, i32
  }
  func.func @transform_4(%arg0: i32) -> (i32, i32) {
    %c0_i32 = arith.constant 0 : i32
    %c0_i32_0 = arith.constant 0 : i32
    %c0_i32_1 = arith.constant 0 : i32
    return %c0_i32, %c0_i32_0 : i32, i32
  }
  func.func @transform_5(%arg0: i32) -> (i32, i32) {
    %c0_i32 = arith.constant 0 : i32
    %c0_i32_0 = arith.constant 0 : i32
    %c0_i32_1 = arith.constant 0 : i32
    return %c0_i32, %c0_i32_0 : i32, i32
  }
}

</mosaic_0001>

<llo_original>
// kernel: _cls_forward.1
$region0: #{_cls_forward.1}
  #allocation0 [shape = 'u32[]', space=smem, size = 0x4, offset = 0x4, fixed_abs, tag = 'smem constant byte address 0x4 - core index']
  #allocation1 [shape = 'u32[144,128]{1,0:T(1,128)}', space=vmem, size = 0x12000, scoped, tag = 'internal scratch']
  %s0 = inlined_call_operand.vmem [shape: f32[37,512], index: 0, kind: input, shape index: {}]
  %s1 = inlined_call_operand.vmem [shape: f32[8,37], index: 1, kind: input, shape index: {}]
  %s2 = inlined_call_operand.vmem [shape: f32[2,512], index: 2, kind: input, shape index: {}]
  %s3 = inlined_call_operand.vmem [shape: f32[8,128], index: 3, kind: input, shape index: {}]
  %s4 = inlined_call_operand.vmem [shape: f32[1,128], index: 4, kind: input, shape index: {}]
  %s5 = inlined_call_operand.hbm [shape: f32[2,128], index: 5, kind: output, shape index: {}]
  %s6 = sld [smem:[#allocation0]]
  $region30: #{_cls_forward.1} parent=0
    _
  %s8 = ssub.s32 1, %s6
  %s9 = scalar_select 0, %s8, %s6
  $region1: #{_cls_forward.1} parent=0
    #allocation2 [shape = 'u8[1024]{0}', space=vmem, size = 0x400, scoped, tag = 'output window, operand 0, single buffered']
    #allocation3 [shape = 's32[1]{0}', space=sflag, size = 0x4, scoped, tag = 'scoped memory for _cls_forward.1']
    %10 = vsyncpa [#allocation3], 0
    // Predicated region
    $region2: #{_cls_forward.1} parent=1 // pred_check
      _
    $region3: #{_cls_forward.1} parent=1 // pred_check_branch
      %12 = sbr.rel (0) target = $region5
    $region4: #{_cls_forward.1} parent=1 // pred_region
      _
    $region5: #{_cls_forward.1} parent=1 // pred_fallthru
      _
    // Predicated region
    $region6: #{_cls_forward.1} parent=1 // pred_check
      _
    $region7: #{_cls_forward.1} parent=1 // pred_check_branch
      %14 = sbr.rel (0) target = $region9
    $region8: #{_cls_forward.1} parent=1 // pred_region
      _
    $region9: #{_cls_forward.1} parent=1 // pred_fallthru
      _
    // Predicated region
    $region10: #{_cls_forward.1} parent=1 // pred_check
      _
    $region11: #{_cls_forward.1} parent=1 // pred_check_branch
      %16 = sbr.rel (0) target = $region13
    $region12: #{_cls_forward.1} parent=1 // pred_region
      _
    $region13: #{_cls_forward.1} parent=1 // pred_fallthru
      _
    // Predicated region
    $region14: #{_cls_forward.1} parent=1 // pred_check
      _
    $region15: #{_cls_forward.1} parent=1 // pred_check_branch
      %18 = sbr.rel (0) target = $region17
    $region16: #{_cls_forward.1} parent=1 // pred_region
      _
    $region17: #{_cls_forward.1} parent=1 // pred_fallthru
      _
    // Predicated region
    $region18: #{_cls_forward.1} parent=1 // pred_check
      _
    $region19: #{_cls_forward.1} parent=1 // pred_check_branch
      %20 = sbr.rel (0) target = $region21
    $region20: #{_cls_forward.1} parent=1 // pred_region
      _
    $region21: #{_cls_forward.1} parent=1 // pred_fallthru
      _
    %v21 = vld [vmem:[%s1] sm:$0xff]
    %v22 = vld [vmem:[%s0] sm:$0xff]
    %v23 = vld [vmem:[%s0 + $0x8] sm:$0xff]
    %v24 = vld [vmem:[%s0 + $0x10] sm:$0xff]
    %v25 = vld [vmem:[%s0 + $0x18] sm:$0xff]
    %v26 = vld [vmem:[%s0 + $0x20] sm:$0xff]
    %v27 = vld [vmem:[%s0 + $0x28] sm:$0xff]
    %v28 = vld [vmem:[%s0 + $0x30] sm:$0xff]
    %v29 = vld [vmem:[%s0 + $0x38] sm:$0xff]
    %v30 = vld [vmem:[%s0 + $0x40] sm:$0xff]
    %v31 = vld [vmem:[%s0 + $0x48] sm:$0xff]
    %v32 = vld [vmem:[%s0 + $0x50] sm:$0xff]
    %v33 = vld [vmem:[%s0 + $0x58] sm:$0xff]
    %v34 = vld [vmem:[%s0 + $0x60] sm:$0xff]
    %v35 = vld [vmem:[%s0 + $0x68] sm:$0xff]
    %v36 = vld [vmem:[%s0 + $0x70] sm:$0xff]
    %v37 = vld [vmem:[%s0 + $0x78] sm:$0xff]
    %v38 = vld [vmem:[%s0 + $0x80] sm:$0x1f]
    %v39 = vld [vmem:[%s0 + $0x88] sm:$0x1f]
    %v40 = vld [vmem:[%s0 + $0x90] sm:$0x1f]
    %v41 = vld [vmem:[%s0 + $0x98] sm:$0x1f]
    %vm42 = vcmask 302080
    %v44 = vsel %vm42, %v21, 0
    %vm46 = vcmask 1044480
    %v48 = vsel %vm46, %v38, 0
    %v51 = vsel %vm46, %v39, 0
    %v54 = vsel %vm46, %v40, 0
    %v57 = vsel %vm46, %v41, 0
    %59 = vmatprep.subr.mxu0 0.0
    %60 = vmatpush1.msra.mxu0 0.0
    %61 = vmatprep.subr.mxu0 0.0
    %62 = vmatpush1.msra.mxu0 0.0
    %63 = vmatprep.subr.mxu0 0.0
    %64 = vmatpush1.msra.mxu0 0.0
    %65 = vmatprep.subr.mxu0 0.0
    %66 = vmatpush1.msra.mxu0 0.0
    %67 = vmatprep.subr.mxu0 0.0
    %68 = vmatpush1.msra.mxu0 0.0
    %69 = vmatprep.subr.mxu0 0.0
    %70 = vmatpush1.msra.mxu0 0.0
    %71 = vmatprep.subr.mxu0 0.0
    %72 = vmatpush1.msra.mxu0 0.0
    %73 = vmatprep.subr.mxu0 0.0
    %74 = vmatpush1.msra.mxu0 0.0
    %75 = vmatprep.subr.mxu0 0.0
    %76 = vmatpush1.msra.mxu0 0.0
    %77 = vmatprep.subr.mxu0 0.0
    %78 = vmatpush1.msra.mxu0 0.0
    %79 = vmatprep.subr.mxu0 0.0
    %80 = vmatpush1.msra.mxu0 0.0
    %81 = vmatprep.subr.mxu0 %v51
    %82 = vmatpush1.msra.mxu0 %v48
    %83 = vmatprep.subr.mxu0 %v35
    %84 = vmatpush1.msra.mxu0 %v34
    %85 = vmatprep.subr.mxu0 %v31
    %86 = vmatpush1.msra.mxu0 %v30
    %87 = vmatprep.subr.mxu0 %v27
    %88 = vmatpush1.msra.mxu0 %v26
    %89 = vmatprep.subr.mxu0 %v23
    %90 = vmatpush1.msra.mxu0 %v22
    %91 = vmatprep.subr.mxu0 0.0
    %92 = vmatpush2.msra.mxu0 0.0
    %93 = vmatprep.subr.mxu0 0.0
    %94 = vmatpush2.msra.mxu0 0.0
    %95 = vmatprep.subr.mxu0 0.0
    %96 = vmatpush2.msra.mxu0 0.0
    %97 = vmatprep.subr.mxu0 0.0
    %98 = vmatpush2.msra.mxu0 0.0
    %99 = vmatprep.subr.mxu0 0.0
    %100 = vmatpush2.msra.mxu0 0.0
    %101 = vmatprep.subr.mxu0 0.0
    %102 = vmatpush2.msra.mxu0 0.0
    %103 = vmatprep.subr.mxu0 0.0
    %104 = vmatpush2.msra.mxu0 0.0
    %105 = vmatprep.subr.mxu0 0.0
    %106 = vmatpush2.msra.mxu0 0.0
    %107 = vmatprep.subr.mxu0 0.0
    %108 = vmatpush2.msra.mxu0 0.0
    %109 = vmatprep.subr.mxu0 0.0
    %110 = vmatpush2.msra.mxu0 0.0
    %111 = vmatprep.subr.mxu0 0.0
    %112 = vmatpush2.msra.mxu0 0.0
    %113 = vmatprep.subr.mxu0 0.0
    %114 = vmatpush2.msra.mxu0 0.0
    %115 = vmatprep.subr.mxu0 0.0
    %116 = vmatpush2.msra.mxu0 0.0
    %117 = vmatprep.subr.mxu0 0.0
    %118 = vmatpush2.msra.mxu0 0.0
    %119 = vmatprep.subr.mxu0 0.0
    %120 = vmatpush2.msra.mxu0 0.0
    %121 = vmatprep.subr.mxu0 0.0
    %122 = vmatpush2.msra.mxu0 0.0
    %123 = vmatprep.mubr.f32.mxu0 0.0
    %124 = vmatmul.mubr.f32.gmra.mxu0 %v44
    %v125 = vpop.f32.mrf.mxu0
    %v126 = vadd.f32 0.0, %v125
    %v127 = vpop.f32.mrf.mxu0
    %v128 = vadd.f32 0.0, %v127
    %129 = vdwg.mxu0
    %130 = vmatprep.subr.mxu0 0.0
    %131 = vmatpush1.msra.mxu0 0.0
    %132 = vmatprep.subr.mxu0 0.0
    %133 = vmatpush1.msra.mxu0 0.0
    %134 = vmatprep.subr.mxu0 0.0
    %135 = vmatpush1.msra.mxu0 0.0
    %136 = vmatprep.subr.mxu0 0.0
    %137 = vmatpush1.msra.mxu0 0.0
    %138 = vmatprep.subr.mxu0 0.0
    %139 = vmatpush1.msra.mxu0 0.0
    %140 = vmatprep.subr.mxu0 0.0
    %141 = vmatpush1.msra.mxu0 0.0
    %142 = vmatprep.subr.mxu0 0.0
    %143 = vmatpush1.msra.mxu0 0.0
    %144 = vmatprep.subr.mxu0 0.0
    %145 = vmatpush1.msra.mxu0 0.0
    %146 = vmatprep.subr.mxu0 0.0
    %147 = vmatpush1.msra.mxu0 0.0
    %148 = vmatprep.subr.mxu0 0.0
    %149 = vmatpush1.msra.mxu0 0.0
    %150 = vmatprep.subr.mxu0 0.0
    %151 = vmatpush1.msra.mxu0 0.0
    %152 = vmatprep.subr.mxu0 %v57
    %153 = vmatpush1.msra.mxu0 %v54
    %154 = vmatprep.subr.mxu0 %v37
    %155 = vmatpush1.msra.mxu0 %v36
    %156 = vmatprep.subr.mxu0 %v33
    %157 = vmatpush1.msra.mxu0 %v32
    %158 = vmatprep.subr.mxu0 %v29
    %159 = vmatpush1.msra.mxu0 %v28
    %160 = vmatprep.subr.mxu0 %v25
    %161 = vmatpush1.msra.mxu0 %v24
    %162 = vmatprep.subr.mxu0 0.0
    %163 = vmatpush2.msra.mxu0 0.0
    %164 = vmatprep.subr.mxu0 0.0
    %165 = vmatpush2.msra.mxu0 0.0
    %166 = vmatprep.subr.mxu0 0.0
    %167 = vmatpush2.msra.mxu0 0.0
    %168 = vmatprep.subr.mxu0 0.0
    %169 = vmatpush2.msra.mxu0 0.0
    %170 = vmatprep.subr.mxu0 0.0
    %171 = vmatpush2.msra.mxu0 0.0
    %172 = vmatprep.subr.mxu0 0.0
    %173 = vmatpush2.msra.mxu0 0.0
    %174 = vmatprep.subr.mxu0 0.0
    %175 = vmatpush2.msra.mxu0 0.0
    %176 = vmatprep.subr.mxu0 0.0
    %177 = vmatpush2.msra.mxu0 0.0
    %178 = vmatprep.subr.mxu0 0.0
    %179 = vmatpush2.msra.mxu0 0.0
    %180 = vmatprep.subr.mxu0 0.0
    %181 = vmatpush2.msra.mxu0 0.0
    %182 = vmatprep.subr.mxu0 0.0
    %183 = vmatpush2.msra.mxu0 0.0
    %184 = vmatprep.subr.mxu0 0.0
    %185 = vmatpush2.msra.mxu0 0.0
    %186 = vmatprep.subr.mxu0 0.0
    %187 = vmatpush2.msra.mxu0 0.0
    %188 = vmatprep.subr.mxu0 0.0
    %189 = vmatpush2.msra.mxu0 0.0
    %190 = vmatprep.subr.mxu0 0.0
    %191 = vmatpush2.msra.mxu0 0.0
    %192 = vmatprep.subr.mxu0 0.0
    %193 = vmatpush2.msra.mxu0 0.0
    %194 = vmatprep.mubr.f32.mxu0 0.0
    %195 = vmatmul.mubr.f32.gmra.mxu0 %v44
    %v196 = vpop.f32.mrf.mxu0
    %v197 = vadd.f32 0.0, %v196
    %v198 = vpop.f32.mrf.mxu0
    %v199 = vadd.f32 0.0, %v198
    %200 = vdwg.mxu0
    %v201 = vmax.f32 %v126, 0.0
    %v202 = vmax.f32 %v128, 0.0
    %v203 = vmax.f32 %v197, 0.0
    %v204 = vmax.f32 %v199, 0.0
    %v205 = vld [vmem:[%s2] sm:$0xff]
    %v207 = vcombine.high %v205, %v205
    %v209 = vunpack.c.l.s4 1983009808
    %v210 = vunpack.c.0.s8 %v209
    %v211 = vlaneseq
    %v212 = vshrl.u32 %v211, 7
    %v213 = vsub.s32 %v210, %v212
    %v214 = vrot.slane %v205, %v213
    %v216 = vunpack.c.l.s4 1983009808
    %v217 = vunpack.c.0.s8 %v216
    %v218 = vlaneseq
    %v219 = vshrl.u32 %v218, 7
    %v220 = vsub.s32 %v217, %v219
    %v221 = vrot.slane %v207, %v220
    %v222 = vcombine.high %v214, %v214
    %v223 = vcombine.high %v221, %v221
    %228 = vmatprep.subr.mxu0 0.0
    %229 = vmatpush1.xpose.msra.mxu0 0.0
    %230 = vmatprep.subr.mxu0 0.0
    %231 = vmatpush1.xpose.msra.mxu0 0.0
    %232 = vmatprep.subr.mxu0 0.0
    %233 = vmatpush1.xpose.msra.mxu0 0.0
    %234 = vmatprep.subr.mxu0 0.0
    %235 = vmatpush1.xpose.msra.mxu0 0.0
    %236 = vmatprep.subr.mxu0 0.0
    %237 = vmatpush1.xpose.msra.mxu0 0.0
    %238 = vmatprep.subr.mxu0 0.0
    %239 = vmatpush1.xpose.msra.mxu0 0.0
    %240 = vmatprep.subr.mxu0 0.0
    %241 = vmatpush1.xpose.msra.mxu0 0.0
    %242 = vmatprep.subr.mxu0 0.0
    %243 = vmatpush1.xpose.msra.mxu0 0.0
    %244 = vmatprep.subr.mxu0 0.0
    %245 = vmatpush1.xpose.msra.mxu0 0.0
    %246 = vmatprep.subr.mxu0 0.0
    %247 = vmatpush1.xpose.msra.mxu0 0.0
    %248 = vmatprep.subr.mxu0 0.0
    %249 = vmatpush1.xpose.msra.mxu0 0.0
    %250 = vmatprep.subr.mxu0 0.0
    %251 = vmatpush1.xpose.msra.mxu0 0.0
    %252 = vmatprep.subr.mxu0 0.0
    %253 = vmatpush1.xpose.msra.mxu0 0.0
    %254 = vmatprep.subr.mxu0 0.0
    %255 = vmatpush1.xpose.msra.mxu0 0.0
    %256 = vmatprep.subr.mxu0 0.0
    %257 = vmatpush1.xpose.msra.mxu0 0.0
    %258 = vmatprep.subr.mxu0 %v202
    %259 = vmatpush1.xpose.msra.mxu0 %v201
    %260 = vmatprep.subr.mxu0 0.0
    %261 = vmatpush2.xpose.msra.mxu0 0.0
    %262 = vmatprep.subr.mxu0 0.0
    %263 = vmatpush2.xpose.msra.mxu0 0.0
    %264 = vmatprep.subr.mxu0 0.0
    %265 = vmatpush2.xpose.msra.mxu0 0.0
    %266 = vmatprep.subr.mxu0 0.0
    %267 = vmatpush2.xpose.msra.mxu0 0.0
    %268 = vmatprep.subr.mxu0 0.0
    %269 = vmatpush2.xpose.msra.mxu0 0.0
    %270 = vmatprep.subr.mxu0 0.0
    %271 = vmatpush2.xpose.msra.mxu0 0.0
    %272 = vmatprep.subr.mxu0 0.0
    %273 = vmatpush2.xpose.msra.mxu0 0.0
    %274 = vmatprep.subr.mxu0 0.0
    %275 = vmatpush2.xpose.msra.mxu0 0.0
    %276 = vmatprep.subr.mxu0 0.0
    %277 = vmatpush2.xpose.msra.mxu0 0.0
    %278 = vmatprep.subr.mxu0 0.0
    %279 = vmatpush2.xpose.msra.mxu0 0.0
    %280 = vmatprep.subr.mxu0 0.0
    %281 = vmatpush2.xpose.msra.mxu0 0.0
    %282 = vmatprep.subr.mxu0 0.0
    %283 = vmatpush2.xpose.msra.mxu0 0.0
    %284 = vmatprep.subr.mxu0 0.0
    %285 = vmatpush2.xpose.msra.mxu0 0.0
    %286 = vmatprep.subr.mxu0 0.0
    %287 = vmatpush2.xpose.msra.mxu0 0.0
    %288 = vmatprep.subr.mxu0 0.0
    %289 = vmatpush2.xpose.msra.mxu0 0.0
    %290 = vmatprep.subr.mxu0 0.0
    %291 = vmatpush2.xpose.msra.mxu0 0.0
    %292 = vmatprep.mubr.f32.mxu0 %v222
    %293 = vmatmul.mubr.f32.gmra.mxu0 %v214
    %v294 = vpop.f32.mrf.mxu0
    %v295 = vadd.f32 0.0, %v294
    %v296 = vpop.f32.mrf.mxu0
    %297 = vdwg.mxu0
    %298 = vmatprep.subr.mxu0 0.0
    %299 = vmatpush1.xpose.msra.mxu0 0.0
    %300 = vmatprep.subr.mxu0 0.0
    %301 = vmatpush1.xpose.msra.mxu0 0.0
    %302 = vmatprep.subr.mxu0 0.0
    %303 = vmatpush1.xpose.msra.mxu0 0.0
    %304 = vmatprep.subr.mxu0 0.0
    %305 = vmatpush1.xpose.msra.mxu0 0.0
    %306 = vmatprep.subr.mxu0 0.0
    %307 = vmatpush1.xpose.msra.mxu0 0.0
    %308 = vmatprep.subr.mxu0 0.0
    %309 = vmatpush1.xpose.msra.mxu0 0.0
    %310 = vmatprep.subr.mxu0 0.0
    %311 = vmatpush1.xpose.msra.mxu0 0.0
    %312 = vmatprep.subr.mxu0 0.0
    %313 = vmatpush1.xpose.msra.mxu0 0.0
    %314 = vmatprep.subr.mxu0 0.0
    %315 = vmatpush1.xpose.msra.mxu0 0.0
    %316 = vmatprep.subr.mxu0 0.0
    %317 = vmatpush1.xpose.msra.mxu0 0.0
    %318 = vmatprep.subr.mxu0 0.0
    %319 = vmatpush1.xpose.msra.mxu0 0.0
    %320 = vmatprep.subr.mxu0 0.0
    %321 = vmatpush1.xpose.msra.mxu0 0.0
    %322 = vmatprep.subr.mxu0 0.0
    %323 = vmatpush1.xpose.msra.mxu0 0.0
    %324 = vmatprep.subr.mxu0 0.0
    %325 = vmatpush1.xpose.msra.mxu0 0.0
    %326 = vmatprep.subr.mxu0 0.0
    %327 = vmatpush1.xpose.msra.mxu0 0.0
    %328 = vmatprep.subr.mxu0 %v204
    %329 = vmatpush1.xpose.msra.mxu0 %v203
    %330 = vmatprep.subr.mxu0 0.0
    %331 = vmatpush2.xpose.msra.mxu0 0.0
    %332 = vmatprep.subr.mxu0 0.0
    %333 = vmatpush2.xpose.msra.mxu0 0.0
    %334 = vmatprep.subr.mxu0 0.0
    %335 = vmatpush2.xpose.msra.mxu0 0.0
    %336 = vmatprep.subr.mxu0 0.0
    %337 = vmatpush2.xpose.msra.mxu0 0.0
    %338 = vmatprep.subr.mxu0 0.0
    %339 = vmatpush2.xpose.msra.mxu0 0.0
    %340 = vmatprep.subr.mxu0 0.0
    %341 = vmatpush2.xpose.msra.mxu0 0.0
    %342 = vmatprep.subr.mxu0 0.0
    %343 = vmatpush2.xpose.msra.mxu0 0.0
    %344 = vmatprep.subr.mxu0 0.0
    %345 = vmatpush2.xpose.msra.mxu0 0.0
    %346 = vmatprep.subr.mxu0 0.0
    %347 = vmatpush2.xpose.msra.mxu0 0.0
    %348 = vmatprep.subr.mxu0 0.0
    %349 = vmatpush2.xpose.msra.mxu0 0.0
    %350 = vmatprep.subr.mxu0 0.0
    %351 = vmatpush2.xpose.msra.mxu0 0.0
    %352 = vmatprep.subr.mxu0 0.0
    %353 = vmatpush2.xpose.msra.mxu0 0.0
    %354 = vmatprep.subr.mxu0 0.0
    %355 = vmatpush2.xpose.msra.mxu0 0.0
    %356 = vmatprep.subr.mxu0 0.0
    %357 = vmatpush2.xpose.msra.mxu0 0.0
    %358 = vmatprep.subr.mxu0 0.0
    %359 = vmatpush2.xpose.msra.mxu0 0.0
    %360 = vmatprep.subr.mxu0 0.0
    %361 = vmatpush2.xpose.msra.mxu0 0.0
    %362 = vmatprep.mubr.f32.mxu0 %v223
    %363 = vmatmul.mubr.f32.gmra.mxu0 %v221
    %v364 = vpop.f32.mrf.mxu0
    %v365 = vadd.f32 %v295, %v364
    %v366 = vpop.f32.mrf.mxu0
    %367 = vdwg.mxu0
    %v368 = vld [vmem:[%s3] sm:$0xff]
    %v369 = vld [vmem:[%s4] sm:$0x1]
    %v371 = vlaneseq
    %v372 = vshrl.u32 %v371, 7
    %v373 = vsub.s32 0, %v372
    %v374 = vrot.slane %v369, %v373
    %vm376 = vcmask 64512
    %v378 = vsel %vm376, %v365, 0
    %380 = vmatprep.subr.mxu0 0.0
    %381 = vmatpush1.msra.mxu0 0.0
    %382 = vmatprep.subr.mxu0 0.0
    %383 = vmatpush1.msra.mxu0 0.0
    %384 = vmatprep.subr.mxu0 0.0
    %385 = vmatpush1.msra.mxu0 0.0
    %386 = vmatprep.subr.mxu0 0.0
    %387 = vmatpush1.msra.mxu0 0.0
    %388 = vmatprep.subr.mxu0 0.0
    %389 = vmatpush1.msra.mxu0 0.0
    %390 = vmatprep.subr.mxu0 0.0
    %391 = vmatpush1.msra.mxu0 0.0
    %392 = vmatprep.subr.mxu0 0.0
    %393 = vmatpush1.msra.mxu0 0.0
    %394 = vmatprep.subr.mxu0 0.0
    %395 = vmatpush1.msra.mxu0 0.0
    %396 = vmatprep.subr.mxu0 0.0
    %397 = vmatpush1.msra.mxu0 0.0
    %398 = vmatprep.subr.mxu0 0.0
    %399 = vmatpush1.msra.mxu0 0.0
    %400 = vmatprep.subr.mxu0 0.0
    %401 = vmatpush1.msra.mxu0 0.0
    %402 = vmatprep.subr.mxu0 0.0
    %403 = vmatpush1.msra.mxu0 0.0
    %404 = vmatprep.subr.mxu0 0.0
    %405 = vmatpush1.msra.mxu0 0.0
    %406 = vmatprep.subr.mxu0 0.0
    %407 = vmatpush1.msra.mxu0 0.0
    %408 = vmatprep.subr.mxu0 0.0
    %409 = vmatpush1.msra.mxu0 0.0
    %410 = vmatprep.subr.mxu0 0.0
    %411 = vmatpush1.msra.mxu0 %v368
    %412 = vmatprep.subr.mxu0 0.0
    %413 = vmatpush2.msra.mxu0 0.0
    %414 = vmatprep.subr.mxu0 0.0
    %415 = vmatpush2.msra.mxu0 0.0
    %416 = vmatprep.subr.mxu0 0.0
    %417 = vmatpush2.msra.mxu0 0.0
    %418 = vmatprep.subr.mxu0 0.0
    %419 = vmatpush2.msra.mxu0 0.0
    %420 = vmatprep.subr.mxu0 0.0
    %421 = vmatpush2.msra.mxu0 0.0
    %422 = vmatprep.subr.mxu0 0.0
    %423 = vmatpush2.msra.mxu0 0.0
    %424 = vmatprep.subr.mxu0 0.0
    %425 = vmatpush2.msra.mxu0 0.0
    %426 = vmatprep.subr.mxu0 0.0
    %427 = vmatpush2.msra.mxu0 0.0
    %428 = vmatprep.subr.mxu0 0.0
    %429 = vmatpush2.msra.mxu0 0.0
    %430 = vmatprep.subr.mxu0 0.0
    %431 = vmatpush2.msra.mxu0 0.0
    %432 = vmatprep.subr.mxu0 0.0
    %433 = vmatpush2.msra.mxu0 0.0
    %434 = vmatprep.subr.mxu0 0.0
    %435 = vmatpush2.msra.mxu0 0.0
    %436 = vmatprep.subr.mxu0 0.0
    %437 = vmatpush2.msra.mxu0 0.0
    %438 = vmatprep.subr.mxu0 0.0
    %439 = vmatpush2.msra.mxu0 0.0
    %440 = vmatprep.subr.mxu0 0.0
    %441 = vmatpush2.msra.mxu0 0.0
    %442 = vmatprep.subr.mxu0 0.0
    %443 = vmatpush2.msra.mxu0 0.0
    %444 = vmatprep.mubr.f32.mxu0 0.0
    %445 = vmatmul.mubr.f32.gmra.mxu0 %v378
    %v446 = vpop.f32.mrf.mxu0
    %v447 = vadd.f32 %v374, %v446
    %v448 = vpop.f32.mrf.mxu0
    %449 = vdwg.mxu0
    %450 = vst [vmem:[#allocation2] sm:$0x3] %v447
    // Predicated region
    $region22: #{_cls_forward.1} parent=1 // pred_check
      _
    $region23: #{_cls_forward.1} parent=1 // pred_check_branch
      %452 = sbr.rel (0) target = $region25
    $region24: #{_cls_forward.1} parent=1 // pred_region
      %s454 = ssub.s32 32, 32
      %455 = vsyncadd [#allocation3], %s454
      %s457 = sshll.u32 [#allocation2], 4
      %s458 = int_to_ptr.vmem [resolvable:$true] %s457
      %460 = dma.vmem_to_hbm [thread:$0]  %s458, 32, %s5, [#allocation3]
    $region25: #{_cls_forward.1} parent=1 // pred_fallthru
      _
    // Predicated region
    $region26: #{_cls_forward.1} parent=1 // pred_check
      _
    $region27: #{_cls_forward.1} parent=1 // pred_check_branch
      %462 = sbr.rel (0) target = $region29
    $region28: #{_cls_forward.1} parent=1 // pred_region
      %463 = dma.done [#allocation3], 32
    $region29: #{_cls_forward.1} parent=1 // pred_fallthru
      _
    %464 = vsyncpa [#allocation3], 1

</llo_original>
